<compile_context>
chip_gen: v6e
topology: v6e:2x2x1
jax: 0.10.0
libtpu: 0.0.40
codegen_flags: <defaults>
</compile_context>

<pallas_src>
import functools
import math

import jax
import jax.numpy as jnp
from jax.experimental import pallas as pl
from jax.experimental.pallas import tpu as pltpu


# ---------------------------------------------------------------------------
# Kernel 1: fused Q/K/V projection over flattened (B*L, E) rows.
# ---------------------------------------------------------------------------
def _qkv_proj_kernel(xq_ref, xk_ref, xv_ref,
                     wq_ref, bq_ref, wv_ref, bv_ref, wk_ref, bk_ref,
                     q_out, k_out, v_out):
    # Reference quirk: q = W_Q(query), k = W_V(key), v = W_K(value).
    # Weights are bf16 (MXU fast path), biases f32, accumulation f32, outputs bf16.
    q_out[...] = (jnp.dot(xq_ref[...], wq_ref[...],
                          preferred_element_type=jnp.float32)
                  + bq_ref[...]).astype(q_out.dtype)
    k_out[...] = (jnp.dot(xk_ref[...], wv_ref[...],
                          preferred_element_type=jnp.float32)
                  + bv_ref[...]).astype(k_out.dtype)
    v_out[...] = (jnp.dot(xv_ref[...], wk_ref[...],
                          preferred_element_type=jnp.float32)
                  + bk_ref[...]).astype(v_out.dtype)


# ---------------------------------------------------------------------------
# Kernel 2: flash (online-softmax) multi-head attention on pre-projected q/k/v.
# ---------------------------------------------------------------------------
def _flash_mhsa_kernel(q_ref, k_ref, v_ref, o_ref, m_sc, l_sc, acc_sc,
                       *, n_head, exp_dtype):
    """One (batch-block, q-tile, kv-tile) grid step.

    q_ref : (BB, TQ,  E) bf16, already scaled by 1/sqrt(Dh) (folded into W_Q)
    k_ref : (BB, TKV, E) bf16
    v_ref : (BB, TKV, E) bf16
    o_ref : (BB, TQ,  E) output dtype
    m_sc  : (BB, TQ, n_head) f32  running row max (per head)
    l_sc  : (BB, TQ, n_head) f32  running softmax denominator (per head)
    acc_sc: (BB, TQ, E)      f32  running (unnormalized) P@V, heads packed along E
    """
    kv = pl.program_id(2)
    _, _, E = q_ref.shape
    Dh = E // n_head

    @pl.when(kv == 0)
    def _():
        m_sc[...] = jnp.full(m_sc.shape, -jnp.inf, jnp.float32)
        l_sc[...] = jnp.zeros(l_sc.shape, jnp.float32)
        acc_sc[...] = jnp.zeros(acc_sc.shape, jnp.float32)

    q = q_ref[...]          # (BB, TQ,  E) bf16
    k = k_ref[...]          # (BB, TKV, E) bf16
    v = v_ref[...]          # (BB, TKV, E) bf16

    for h in range(n_head):                       # static, small, unrolled
        hs = slice(h * Dh, (h + 1) * Dh)

        # QK^T ("NT" contraction on the last dim, no explicit transpose), f32 acc.
        s = jnp.einsum("bqd,bkd->bqk", q[:, :, hs], k[:, :, hs],
                       preferred_element_type=jnp.float32)      # (BB, TQ, TKV)

        m_prev = m_sc[:, :, h:h + 1]                             # (BB, TQ, 1)
        m_new = jnp.maximum(m_prev, jnp.max(s, axis=-1, keepdims=True))
        alpha = jnp.exp(m_prev - m_new)                          # f32, tiny

        # exp in bf16 by default (EUP bf16 on v6e/v7x); stats accumulate in f32.
        p = jnp.exp((s - m_new).astype(exp_dtype))               # (BB, TQ, TKV)
        p_mxu = p.astype(jnp.bfloat16)                           # no-op if already bf16

        l_sc[:, :, h:h + 1] = alpha * l_sc[:, :, h:h + 1] + jnp.sum(
            p, axis=-1, keepdims=True, dtype=jnp.float32)

        acc_sc[:, :, hs] = alpha * acc_sc[:, :, hs] + jnp.einsum(
            "bqk,bkd->bqd", p_mxu, v[:, :, hs],
            preferred_element_type=jnp.float32)

        m_sc[:, :, h:h + 1] = m_new

    @pl.when(kv == pl.num_programs(2) - 1)
    def _():
        # Normalize per head inside the f32 scratch, then one full-width,
        # lane-dense store (no concat / per-head masked column stores).
        for h in range(n_head):
            hs = slice(h * Dh, (h + 1) * Dh)
            inv = pl.reciprocal(l_sc[:, :, h:h + 1], approx=True)
            acc_sc[:, :, hs] = acc_sc[:, :, hs] * inv
        o_ref[...] = acc_sc[...].astype(o_ref.dtype)


# ---------------------------------------------------------------------------
# Wrapper
# ---------------------------------------------------------------------------
def multi_head_self_attention(query, key, value, params, n_head, *,
                              q_tile=None, kv_tile=None,
                              exp_dtype=jnp.bfloat16):
    """params: W_Q/W_K/W_V (E,E) in PyTorch (out,in) layout, b_Q/b_K/b_V (E,)."""
    B, L, E = query.shape
    assert E % n_head == 0
    Dh = E // n_head
    scale = 1.0 / math.sqrt(Dh)

    # --- one-time weight prep: transpose to (in,out), bf16, fold 1/sqrt(Dh) into Q.
    wq_t = (params["W_Q"].T * scale).astype(jnp.bfloat16)
    bq = (params["b_Q"] * scale).reshape(1, E).astype(jnp.float32)
    wv_t = params["W_V"].T.astype(jnp.bfloat16)
    bv = params["b_V"].reshape(1, E).astype(jnp.float32)
    wk_t = params["W_K"].T.astype(jnp.bfloat16)
    bk = params["b_K"].reshape(1, E).astype(jnp.float32)

    # --- activations to bf16 in the wrapper; merge batch & sequence for the
    #     projection so small problems run in a single grid step.
    N = B * L
    xq = query.reshape(N, E).astype(jnp.bfloat16)
    xk = key.reshape(N, E).astype(jnp.bfloat16)
    xv = value.reshape(N, E).astype(jnp.bfloat16)

    if N <= 512:
        row_tile = N                                   # single step (full-dim block)
    else:
        row_tile = next((t for t in (512, 256, 128, 64, 32, 16, 8) if N % t == 0), N)
    n_rows = N // row_tile

    row_spec = pl.BlockSpec((row_tile, E), lambda i: (i, 0))
    w_spec = pl.BlockSpec((E, E), lambda i: (0, 0))
    b_spec = pl.BlockSpec((1, E), lambda i: (0, 0))

    q_p, k_p, v_p = pl.pallas_call(
        _qkv_proj_kernel,
        out_shape=(jax.ShapeDtypeStruct((N, E), jnp.bfloat16),
                   jax.ShapeDtypeStruct((N, E), jnp.bfloat16),
                   jax.ShapeDtypeStruct((N, E), jnp.bfloat16)),
        grid=(n_rows,),
        in_specs=[row_spec, row_spec, row_spec,
                  w_spec, b_spec, w_spec, b_spec, w_spec, b_spec],
        out_specs=(row_spec, row_spec, row_spec),
        compiler_params=pltpu.CompilerParams(
            dimension_semantics=("parallel",),
            vmem_limit_bytes=32 * 1024 * 1024),
    )(xq, xk, xv, wq_t, bq, wv_t, bv, wk_t, bk)

    q_p = q_p.reshape(B, L, E)
    k_p = k_p.reshape(B, L, E)
    v_p = v_p.reshape(B, L, E)

    # --- attention tiling ---------------------------------------------------
    if q_tile is None:
        q_tile = L if L <= 128 else 128
    if kv_tile is None:
        kv_tile = L if L <= 128 else 128
    assert L % q_tile == 0 and L % kv_tile == 0, \
        "sequence length must be divisible by the q/kv tile sizes"
    n_q = L // q_tile
    n_kv = L // kv_tile

    # Block several batch elements per step when sequences are tiny (amortizes
    # the ~0.35us per-grid-step overhead); 1 for long sequences.
    bb = 1 if q_tile >= 128 else max(1, min(B, 128 // q_tile))
    while B % bb:
        bb -= 1
    n_b = B // bb

    kernel = functools.partial(_flash_mhsa_kernel,
                               n_head=n_head, exp_dtype=exp_dtype)

    return pl.pallas_call(
        kernel,
        out_shape=jax.ShapeDtypeStruct((B, L, E), query.dtype),
        grid=(n_b, n_q, n_kv),
        in_specs=[
            pl.BlockSpec((bb, q_tile, E), lambda b, i, kv: (b, i, 0)),   # q tile
            pl.BlockSpec((bb, kv_tile, E), lambda b, i, kv: (b, kv, 0)),  # k tile
            pl.BlockSpec((bb, kv_tile, E), lambda b, i, kv: (b, kv, 0)),  # v tile
        ],
        out_specs=pl.BlockSpec((bb, q_tile, E), lambda b, i, kv: (b, i, 0)),
        scratch_shapes=[
            pltpu.VMEM((bb, q_tile, n_head), jnp.float32),   # running max m
            pltpu.VMEM((bb, q_tile, n_head), jnp.float32),   # running denom l
            pltpu.VMEM((bb, q_tile, E), jnp.float32),        # running P@V acc
        ],
        compiler_params=pltpu.CompilerParams(
            dimension_semantics=("parallel", "parallel", "arbitrary"),
            vmem_limit_bytes=32 * 1024 * 1024),
    )(q_p, k_p, v_p)


# ---------------------------------------------------------------------------
# Pure-JAX f32 reference mirroring the PyTorch forward (incl. the W_V/W_K swap).
# ---------------------------------------------------------------------------
def _reference(query, key, value, params, n_head):
    B, L, E = query.shape
    Dh = E // n_head
    q = query @ params["W_Q"].T + params["b_Q"]
    k = key @ params["W_V"].T + params["b_V"]
    v = value @ params["W_K"].T + params["b_K"]
    q = q.reshape(B, L, n_head, Dh).transpose(0, 2, 1, 3)
    k = k.reshape(B, L, n_head, Dh).transpose(0, 2, 1, 3)
    v = v.reshape(B, L, n_head, Dh).transpose(0, 2, 1, 3)
    s = jnp.einsum("bhld,bhmd->bhlm", q, k) / math.sqrt(Dh)
    p = jax.nn.softmax(s, axis=-1)
    y = jnp.einsum("bhlm,bhmd->bhld", p, v)
    return y.transpose(0, 2, 1, 3).reshape(B, L, E)


if __name__ == "__main__":
    B, L, E, H = 2, 8, 32, 4

    key0 = jax.random.PRNGKey(0)
    ks = jax.random.split(key0, 9)

    bound = 1.0 / math.sqrt(E)
    params = {
        "W_Q": jax.random.uniform(ks[0], (E, E), jnp.float32, -bound, bound),
        "b_Q": jax.random.uniform(ks[1], (E,), jnp.float32, -bound, bound),
        "W_K": jax.random.uniform(ks[2], (E, E), jnp.float32, -bound, bound),
        "b_K": jax.random.uniform(ks[3], (E,), jnp.float32, -bound, bound),
        "W_V": jax.random.uniform(ks[4], (E, E), jnp.float32, -bound, bound),
        "b_V": jax.random.uniform(ks[5], (E,), jnp.float32, -bound, bound),
    }

    query = jax.random.normal(ks[6], (B, L, E), jnp.float32)
    key = jax.random.normal(ks[7], (B, L, E), jnp.float32)
    value = jax.random.normal(ks[8], (B, L, E), jnp.float32)

    out = multi_head_self_attention(query, key, value, params, H)
    out = jax.block_until_ready(out)

    ref = _reference(query, key, value, params, H)
    assert out.shape == (B, L, E)
    # Tolerance accounts for bf16 MXU operands, bf16 exp and approx EUP reciprocal
    # (all statistics / accumulation in f32).
    assert jnp.allclose(out, ref, atol=5e-2, rtol=5e-2), float(jnp.abs(out - ref).max())

    print("KERNEL_OK")
</pallas_src>

<mosaic_0001>
module attributes {stable_mosaic.version = 11 : i64} {
  func.func @_qkv_proj_kernel(%arg0: i32, %arg1: memref<16x32xbf16, #tpu.memory_space<vmem>>, %arg2: memref<16x32xbf16, #tpu.memory_space<vmem>>, %arg3: memref<16x32xbf16, #tpu.memory_space<vmem>>, %arg4: memref<32x32xbf16, #tpu.memory_space<vmem>>, %arg5: memref<1x32xf32, #tpu.memory_space<vmem>>, %arg6: memref<32x32xbf16, #tpu.memory_space<vmem>>, %arg7: memref<1x32xf32, #tpu.memory_space<vmem>>, %arg8: memref<32x32xbf16, #tpu.memory_space<vmem>>, %arg9: memref<1x32xf32, #tpu.memory_space<vmem>>, %arg10: memref<16x32xbf16, #tpu.memory_space<vmem>>, %arg11: memref<16x32xbf16, #tpu.memory_space<vmem>>, %arg12: memref<16x32xbf16, #tpu.memory_space<vmem>>) attributes {dimension_semantics = [#tpu.dimension_semantics<parallel>], iteration_bounds = array<i64: 1>, scalar_prefetch = 0 : i64, scratch_operands = 0 : i64, tpu.core_type = #tpu.core_type<tc>, window_params = [{transform_indices = @transform_0, window_bounds = array<i64: 16, 32>}, {transform_indices = @transform_1, window_bounds = array<i64: 16, 32>}, {transform_indices = @transform_2, window_bounds = array<i64: 16, 32>}, {pipeline_mode = #tpu.pipeline_mode<synchronous>, transform_indices = @transform_3, window_bounds = array<i64: 32, 32>}, {pipeline_mode = #tpu.pipeline_mode<synchronous>, transform_indices = @transform_4, window_bounds = array<i64: 1, 32>}, {pipeline_mode = #tpu.pipeline_mode<synchronous>, transform_indices = @transform_5, window_bounds = array<i64: 32, 32>}, {pipeline_mode = #tpu.pipeline_mode<synchronous>, transform_indices = @transform_6, window_bounds = array<i64: 1, 32>}, {pipeline_mode = #tpu.pipeline_mode<synchronous>, transform_indices = @transform_7, window_bounds = array<i64: 32, 32>}, {pipeline_mode = #tpu.pipeline_mode<synchronous>, transform_indices = @transform_8, window_bounds = array<i64: 1, 32>}, {transform_indices = @transform_9, window_bounds = array<i64: 16, 32>}, {transform_indices = @transform_10, window_bounds = array<i64: 16, 32>}, {transform_indices = @transform_11, window_bounds = array<i64: 16, 32>}]} {
    %c0 = arith.constant 0 : index
    %c0_0 = arith.constant 0 : index
    %0 = vector.load %arg1[%c0, %c0_0] : memref<16x32xbf16, #tpu.memory_space<vmem>>, vector<16x32xbf16>
    %c0_1 = arith.constant 0 : index
    %c0_2 = arith.constant 0 : index
    %1 = vector.load %arg4[%c0_1, %c0_2] : memref<32x32xbf16, #tpu.memory_space<vmem>>, vector<32x32xbf16>
    %cst = arith.constant dense<0.000000e+00> : vector<16x32xf32>
    %2 = tpu.matmul %0, %1, %cst {dimension_numbers = #tpu.dot_dimension_numbers<[1], [0], [0], [1], [0, 0, 1, 1], [], []>} : vector<16x32xbf16>, vector<32x32xbf16>, vector<16x32xf32> -> vector<16x32xf32>
    %c0_3 = arith.constant 0 : index
    %c0_4 = arith.constant 0 : index
    %3 = vector.load %arg5[%c0_3, %c0_4] : memref<1x32xf32, #tpu.memory_space<vmem>>, vector<1x32xf32>
    %4 = vector.broadcast %3 : vector<1x32xf32> to vector<16x32xf32>
    %5 = arith.addf %2, %4 : vector<16x32xf32>
    %6 = arith.truncf %5 : vector<16x32xf32> to vector<16x32xbf16>
    %c0_5 = arith.constant 0 : index
    %c0_6 = arith.constant 0 : index
    %7 = vector.load %arg10[%c0_5, %c0_6] : memref<16x32xbf16, #tpu.memory_space<vmem>>, vector<16x32xbf16>
    tpu.vector_store %arg10[%c0_5, %c0_6], %6 {strides = array<i32>} : memref<16x32xbf16, #tpu.memory_space<vmem>>, vector<16x32xbf16>,
    %c0_7 = arith.constant 0 : index
    %c0_8 = arith.constant 0 : index
    %8 = vector.load %arg2[%c0_7, %c0_8] : memref<16x32xbf16, #tpu.memory_space<vmem>>, vector<16x32xbf16>
    %c0_9 = arith.constant 0 : index
    %c0_10 = arith.constant 0 : index
    %9 = vector.load %arg6[%c0_9, %c0_10] : memref<32x32xbf16, #tpu.memory_space<vmem>>, vector<32x32xbf16>
    %cst_11 = arith.constant dense<0.000000e+00> : vector<16x32xf32>
    %10 = tpu.matmul %8, %9, %cst_11 {dimension_numbers = #tpu.dot_dimension_numbers<[1], [0], [0], [1], [0, 0, 1, 1], [], []>} : vector<16x32xbf16>, vector<32x32xbf16>, vector<16x32xf32> -> vector<16x32xf32>
    %c0_12 = arith.constant 0 : index
    %c0_13 = arith.constant 0 : index
    %11 = vector.load %arg7[%c0_12, %c0_13] : memref<1x32xf32, #tpu.memory_space<vmem>>, vector<1x32xf32>
    %12 = vector.broadcast %11 : vector<1x32xf32> to vector<16x32xf32>
    %13 = arith.addf %10, %12 : vector<16x32xf32>
    %14 = arith.truncf %13 : vector<16x32xf32> to vector<16x32xbf16>
    %c0_14 = arith.constant 0 : index
    %c0_15 = arith.constant 0 : index
    %15 = vector.load %arg11[%c0_14, %c0_15] : memref<16x32xbf16, #tpu.memory_space<vmem>>, vector<16x32xbf16>
    tpu.vector_store %arg11[%c0_14, %c0_15], %14 {strides = array<i32>} : memref<16x32xbf16, #tpu.memory_space<vmem>>, vector<16x32xbf16>,
    %c0_16 = arith.constant 0 : index
    %c0_17 = arith.constant 0 : index
    %16 = vector.load %arg3[%c0_16, %c0_17] : memref<16x32xbf16, #tpu.memory_space<vmem>>, vector<16x32xbf16>
    %c0_18 = arith.constant 0 : index
    %c0_19 = arith.constant 0 : index
    %17 = vector.load %arg8[%c0_18, %c0_19] : memref<32x32xbf16, #tpu.memory_space<vmem>>, vector<32x32xbf16>
    %cst_20 = arith.constant dense<0.000000e+00> : vector<16x32xf32>
    %18 = tpu.matmul %16, %17, %cst_20 {dimension_numbers = #tpu.dot_dimension_numbers<[1], [0], [0], [1], [0, 0, 1, 1], [], []>} : vector<16x32xbf16>, vector<32x32xbf16>, vector<16x32xf32> -> vector<16x32xf32>
    %c0_21 = arith.constant 0 : index
    %c0_22 = arith.constant 0 : index
    %19 = vector.load %arg9[%c0_21, %c0_22] : memref<1x32xf32, #tpu.memory_space<vmem>>, vector<1x32xf32>
    %20 = vector.broadcast %19 : vector<1x32xf32> to vector<16x32xf32>
    %21 = arith.addf %18, %20 : vector<16x32xf32>
    %22 = arith.truncf %21 : vector<16x32xf32> to vector<16x32xbf16>
    %c0_23 = arith.constant 0 : index
    %c0_24 = arith.constant 0 : index
    %23 = vector.load %arg12[%c0_23, %c0_24] : memref<16x32xbf16, #tpu.memory_space<vmem>>, vector<16x32xbf16>
    tpu.vector_store %arg12[%c0_23, %c0_24], %22 {strides = array<i32>} : memref<16x32xbf16, #tpu.memory_space<vmem>>, vector<16x32xbf16>,
    return
  }
  func.func @transform_0(%arg0: i32) -> (i32, i32) {
    %c0_i32 = arith.constant 0 : i32
    %c0_i32_0 = arith.constant 0 : i32
    return %arg0, %c0_i32 : i32, i32
  }
  func.func @transform_1(%arg0: i32) -> (i32, i32) {
    %c0_i32 = arith.constant 0 : i32
    %c0_i32_0 = arith.constant 0 : i32
    return %arg0, %c0_i32 : i32, i32
  }
  func.func @transform_2(%arg0: i32) -> (i32, i32) {
    %c0_i32 = arith.constant 0 : i32
    %c0_i32_0 = arith.constant 0 : i32
    return %arg0, %c0_i32 : i32, i32
  }
  func.func @transform_3(%arg0: i32) -> (i32, i32) {
    %c0_i32 = arith.constant 0 : i32
    %c0_i32_0 = arith.constant 0 : i32
    %c0_i32_1 = arith.constant 0 : i32
    return %c0_i32, %c0_i32_0 : i32, i32
  }
  func.func @transform_4(%arg0: i32) -> (i32, i32) {
    %c0_i32 = arith.constant 0 : i32
    %c0_i32_0 = arith.constant 0 : i32
    %c0_i32_1 = arith.constant 0 : i32
    return %c0_i32, %c0_i32_0 : i32, i32
  }
  func.func @transform_5(%arg0: i32) -> (i32, i32) {
    %c0_i32 = arith.constant 0 : i32
    %c0_i32_0 = arith.constant 0 : i32
    %c0_i32_1 = arith.constant 0 : i32
    return %c0_i32, %c0_i32_0 : i32, i32
  }
  func.func @transform_6(%arg0: i32) -> (i32, i32) {
    %c0_i32 = arith.constant 0 : i32
    %c0_i32_0 = arith.constant 0 : i32
    %c0_i32_1 = arith.constant 0 : i32
    return %c0_i32, %c0_i32_0 : i32, i32
  }
  func.func @transform_7(%arg0: i32) -> (i32, i32) {
    %c0_i32 = arith.constant 0 : i32
    %c0_i32_0 = arith.constant 0 : i32
    %c0_i32_1 = arith.constant 0 : i32
    return %c0_i32, %c0_i32_0 : i32, i32
  }
  func.func @transform_8(%arg0: i32) -> (i32, i32) {
    %c0_i32 = arith.constant 0 : i32
    %c0_i32_0 = arith.constant 0 : i32
    %c0_i32_1 = arith.constant 0 : i32
    return %c0_i32, %c0_i32_0 : i32, i32
  }
  func.func @transform_9(%arg0: i32) -> (i32, i32) {
    %c0_i32 = arith.constant 0 : i32
    %c0_i32_0 = arith.constant 0 : i32
    return %arg0, %c0_i32 : i32, i32
  }
  func.func @transform_10(%arg0: i32) -> (i32, i32) {
    %c0_i32 = arith.constant 0 : i32
    %c0_i32_0 = arith.constant 0 : i32
    return %arg0, %c0_i32 : i32, i32
  }
  func.func @transform_11(%arg0: i32) -> (i32, i32) {
    %c0_i32 = arith.constant 0 : i32
    %c0_i32_0 = arith.constant 0 : i32
    return %arg0, %c0_i32 : i32, i32
  }
}

</mosaic_0001>

<llo_original>
// kernel: tpu_custom_call.1
$region0: #{tpu_custom_call.1}
  #allocation0 [shape = 'u32[]', space=smem, size = 0x4, offset = 0x4, fixed_abs, tag = 'smem constant byte address 0x4 - core index']
  #allocation1 [shape = 'u32[144,128]{1,0:T(1,128)}', space=vmem, size = 0x12000, scoped, tag = 'internal scratch']
  %s0 = inlined_call_operand.hbm [shape: bf16[16,32], index: 0, kind: input, shape index: {}]
  %s1 = inlined_call_operand.hbm [shape: bf16[16,32], index: 1, kind: input, shape index: {}]
  %s2 = inlined_call_operand.hbm [shape: bf16[16,32], index: 2, kind: input, shape index: {}]
  %s3 = inlined_call_operand.hbm [shape: bf16[32,32], index: 3, kind: input, shape index: {}]
  %s4 = inlined_call_operand.vmem [shape: f32[1,32], index: 4, kind: input, shape index: {}]
  %s5 = inlined_call_operand.hbm [shape: bf16[32,32], index: 5, kind: input, shape index: {}]
  %s6 = inlined_call_operand.vmem [shape: f32[1,32], index: 6, kind: input, shape index: {}]
  %s7 = inlined_call_operand.hbm [shape: bf16[32,32], index: 7, kind: input, shape index: {}]
  %s8 = inlined_call_operand.vmem [shape: f32[1,32], index: 8, kind: input, shape index: {}]
  %s9 = inlined_call_operand.hbm [shape: bf16[16,32], index: 9, kind: output, shape index: {0}]
  %s10 = inlined_call_operand.hbm [shape: bf16[16,32], index: 10, kind: output, shape index: {1}]
  %s11 = inlined_call_operand.hbm [shape: bf16[16,32], index: 11, kind: output, shape index: {2}]
  %12 = xla_tuple %s9, %s10, %s11
  %s13 = sld [smem:[#allocation0]]
  $region86: #{tpu_custom_call.1} parent=0
    _
  %s15 = ssub.s32 1, %s13
  %s16 = scalar_select 0, %s15, %s13
  $region1: #{tpu_custom_call.1} parent=0
    #allocation2 [shape = 'u8[4096]{0}', space=vmem, size = 0x1000, scoped, tag = 'input window, operand 0, single buffered']
    #allocation3 [shape = 's32[1]{0}', space=sflag, size = 0x4, scoped, tag = 'scoped memory for tpu_custom_call.1']
    #allocation4 [shape = 's32[1]{0}', space=sflag, size = 0x4, scoped, tag = 'scoped memory for tpu_custom_call.1']
    #allocation5 [shape = 'u8[4096]{0}', space=vmem, size = 0x1000, scoped, tag = 'input window, operand 1, single buffered']
    #allocation6 [shape = 's32[1]{0}', space=sflag, size = 0x4, scoped, tag = 'scoped memory for tpu_custom_call.1']
    #allocation7 [shape = 'u8[4096]{0}', space=vmem, size = 0x1000, scoped, tag = 'input window, operand 2, single buffered']
    #allocation8 [shape = 'u8[8192]{0}', space=vmem, size = 0x2000, scoped, tag = 'input window, operand 3, single buffered']
    #allocation9 [shape = 's32[1]{0}', space=sflag, size = 0x4, scoped, tag = 'scoped memory for tpu_custom_call.1']
    #allocation10 [shape = 'u8[8192]{0}', space=vmem, size = 0x2000, scoped, tag = 'input window, operand 5, single buffered']
    #allocation11 [shape = 'u8[8192]{0}', space=vmem, size = 0x2000, scoped, tag = 'input window, operand 7, single buffered']
    #allocation12 [shape = 's32[1]{0}', space=sflag, size = 0x4, scoped, tag = 'scoped memory for tpu_custom_call.1']
    #allocation13 [shape = 'u8[4096]{0}', space=vmem, size = 0x1000, scoped, tag = 'output window, operand 0, single buffered']
    #allocation14 [shape = 'u8[4096]{0}', space=vmem, size = 0x1000, scoped, tag = 'output window, operand 1, single buffered']
    #allocation15 [shape = 's32[1]{0}', space=sflag, size = 0x4, scoped, tag = 'scoped memory for tpu_custom_call.1']
    #allocation16 [shape = 'u8[4096]{0}', space=vmem, size = 0x1000, scoped, tag = 'output window, operand 2, single buffered']
    %17 = vsyncpa [#allocation3], 0
    %18 = vsyncpa [#allocation6], 0
    %19 = vsyncpa [#allocation9], 0
    %20 = vsyncpa [#allocation12], 0
    %21 = vsyncpa [#allocation4], 0
    %22 = vsyncpa [#allocation15], 0
    // Predicated region
    $region2: #{tpu_custom_call.1} parent=1 // pred_check
      _
    $region3: #{tpu_custom_call.1} parent=1 // pred_check_branch
      %24 = sbr.rel (0) target = $region5
    $region4: #{tpu_custom_call.1} parent=1 // pred_region
      %s26 = ssub.s32 128, 128
      %27 = vsyncadd [#allocation3], %s26
      %s28 = sshll.u32 [#allocation2], 4
      %s29 = int_to_ptr.vmem [resolvable:$true] %s28
      %34 = dma.hbm_to_vmem [thread:$0]  %s0, 128, %s29, [#allocation3], 64, 64, 4
    $region5: #{tpu_custom_call.1} parent=1 // pred_fallthru
      _
    // Predicated region
    $region6: #{tpu_custom_call.1} parent=1 // pred_check
      _
    $region7: #{tpu_custom_call.1} parent=1 // pred_check_branch
      %36 = sbr.rel (0) target = $region9
    $region8: #{tpu_custom_call.1} parent=1 // pred_region
      %s38 = ssub.s32 128, 128
      %39 = vsyncadd [#allocation6], %s38
      %s40 = sshll.u32 [#allocation5], 4
      %s41 = int_to_ptr.vmem [resolvable:$true] %s40
      %46 = dma.hbm_to_vmem [thread:$0]  %s1, 128, %s41, [#allocation6], 64, 64, 4
    $region9: #{tpu_custom_call.1} parent=1 // pred_fallthru
      _
    // Predicated region
    $region10: #{tpu_custom_call.1} parent=1 // pred_check
      _
    $region11: #{tpu_custom_call.1} parent=1 // pred_check_branch
      %48 = sbr.rel (0) target = $region13
    $region12: #{tpu_custom_call.1} parent=1 // pred_region
      %s50 = ssub.s32 128, 128
      %51 = vsyncadd [#allocation6], %s50
      %s52 = sshll.u32 [#allocation7], 4
      %s53 = int_to_ptr.vmem [resolvable:$true] %s52
      %58 = dma.hbm_to_vmem [thread:$0]  %s2, 128, %s53, [#allocation6], 64, 64, 4
    $region13: #{tpu_custom_call.1} parent=1 // pred_fallthru
      _
    // Predicated region
    $region14: #{tpu_custom_call.1} parent=1 // pred_check
      _
    $region15: #{tpu_custom_call.1} parent=1 // pred_check_branch
      %60 = sbr.rel (0) target = $region17
    $region16: #{tpu_custom_call.1} parent=1 // pred_region
      %s62 = ssub.s32 256, 256
      %63 = vsyncadd [#allocation9], %s62
      %s64 = sshll.u32 [#allocation8], 4
      %s65 = int_to_ptr.vmem [resolvable:$true] %s64
      %70 = dma.hbm_to_vmem [thread:$0]  %s3, 256, %s65, [#allocation9], 64, 64, 4
    $region17: #{tpu_custom_call.1} parent=1 // pred_fallthru
      _
    // Predicated region
    $region18: #{tpu_custom_call.1} parent=1 // pred_check
      _
    $region19: #{tpu_custom_call.1} parent=1 // pred_check_branch
      %72 = sbr.rel (0) target = $region21
    $region20: #{tpu_custom_call.1} parent=1 // pred_region
      _
    $region21: #{tpu_custom_call.1} parent=1 // pred_fallthru
      _
    // Predicated region
    $region22: #{tpu_custom_call.1} parent=1 // pred_check
      _
    $region23: #{tpu_custom_call.1} parent=1 // pred_check_branch
      %74 = sbr.rel (0) target = $region25
    $region24: #{tpu_custom_call.1} parent=1 // pred_region
      %s76 = ssub.s32 256, 256
      %77 = vsyncadd [#allocation9], %s76
      %s78 = sshll.u32 [#allocation10], 4
      %s79 = int_to_ptr.vmem [resolvable:$true] %s78
      %84 = dma.hbm_to_vmem [thread:$0]  %s5, 256, %s79, [#allocation9], 64, 64, 4
    $region25: #{tpu_custom_call.1} parent=1 // pred_fallthru
      _
    // Predicated region
    $region26: #{tpu_custom_call.1} parent=1 // pred_check
      _
    $region27: #{tpu_custom_call.1} parent=1 // pred_check_branch
      %86 = sbr.rel (0) target = $region29
    $region28: #{tpu_custom_call.1} parent=1 // pred_region
      _
    $region29: #{tpu_custom_call.1} parent=1 // pred_fallthru
      _
    // Predicated region
    $region30: #{tpu_custom_call.1} parent=1 // pred_check
      _
    $region31: #{tpu_custom_call.1} parent=1 // pred_check_branch
      %88 = sbr.rel (0) target = $region33
    $region32: #{tpu_custom_call.1} parent=1 // pred_region
      %s90 = ssub.s32 256, 256
      %91 = vsyncadd [#allocation12], %s90
      %s92 = sshll.u32 [#allocation11], 4
      %s93 = int_to_ptr.vmem [resolvable:$true] %s92
      %98 = dma.hbm_to_vmem [thread:$0]  %s7, 256, %s93, [#allocation12], 64, 64, 4
    $region33: #{tpu_custom_call.1} parent=1 // pred_fallthru
      _
    // Predicated region
    $region34: #{tpu_custom_call.1} parent=1 // pred_check
      _
    $region35: #{tpu_custom_call.1} parent=1 // pred_check_branch
      %100 = sbr.rel (0) target = $region37
    $region36: #{tpu_custom_call.1} parent=1 // pred_region
      _
    $region37: #{tpu_custom_call.1} parent=1 // pred_fallthru
      _
    // Predicated region
    $region38: #{tpu_custom_call.1} parent=1 // pred_check
      _
    $region39: #{tpu_custom_call.1} parent=1 // pred_check_branch
      %102 = sbr.rel (0) target = $region41
    $region40: #{tpu_custom_call.1} parent=1 // pred_region
      %103 = dma.done [#allocation3], 128
    $region41: #{tpu_custom_call.1} parent=1 // pred_fallthru
      _
    // Predicated region
    $region42: #{tpu_custom_call.1} parent=1 // pred_check
      _
    $region43: #{tpu_custom_call.1} parent=1 // pred_check_branch
      %105 = sbr.rel (0) target = $region45
    $region44: #{tpu_custom_call.1} parent=1 // pred_region
      %106 = dma.done [#allocation6], 128
    $region45: #{tpu_custom_call.1} parent=1 // pred_fallthru
      _
    // Predicated region
    $region46: #{tpu_custom_call.1} parent=1 // pred_check
      _
    $region47: #{tpu_custom_call.1} parent=1 // pred_check_branch
      %108 = sbr.rel (0) target = $region49
    $region48: #{tpu_custom_call.1} parent=1 // pred_region
      %109 = dma.done [#allocation6], 128
    $region49: #{tpu_custom_call.1} parent=1 // pred_fallthru
      _
    // Predicated region
    $region50: #{tpu_custom_call.1} parent=1 // pred_check
      _
    $region51: #{tpu_custom_call.1} parent=1 // pred_check_branch
      %111 = sbr.rel (0) target = $region53
    $region52: #{tpu_custom_call.1} parent=1 // pred_region
      %112 = dma.done [#allocation9], 256
    $region53: #{tpu_custom_call.1} parent=1 // pred_fallthru
      _
    // Predicated region
    $region54: #{tpu_custom_call.1} parent=1 // pred_check
      _
    $region55: #{tpu_custom_call.1} parent=1 // pred_check_branch
      %114 = sbr.rel (0) target = $region57
    $region56: #{tpu_custom_call.1} parent=1 // pred_region
      %115 = dma.done [#allocation9], 256
    $region57: #{tpu_custom_call.1} parent=1 // pred_fallthru
      _
    // Predicated region
    $region58: #{tpu_custom_call.1} parent=1 // pred_check
      _
    $region59: #{tpu_custom_call.1} parent=1 // pred_check_branch
      %117 = sbr.rel (0) target = $region61
    $region60: #{tpu_custom_call.1} parent=1 // pred_region
      %118 = dma.done [#allocation12], 256
    $region61: #{tpu_custom_call.1} parent=1 // pred_fallthru
      _
    %v120 = vld [vmem:[#allocation2] sm:$0xf]
    %v121 = vld [vmem:[#allocation2 + $0x4] sm:$0xf]
    %v122 = vld [vmem:[#allocation8] sm:$0xf]
    %v123 = vld [vmem:[#allocation8 + $0x4] sm:$0xf]
    %v124 = vld [vmem:[#allocation8 + $0x8] sm:$0xf]
    %v125 = vld [vmem:[#allocation8 + $0xc] sm:$0xf]
    %v126 = vld [vmem:[%s4] sm:$0x1]
    %v128 = vlaneseq
    %v129 = vshrl.u32 %v128, 7
    %v130 = vsub.s32 0, %v129
    %v131 = vrot.slane %v126, %v130
    %v135 = vunpack.c.l.b16 %v120
    %v136 = vunpack.c.l.b16 %v121
    %v137 = vpack.c.b16 %v136, %v135
    %v142 = vunpack.c.l.b16 %v122
    %v143 = vunpack.c.l.b16 %v123
    %v144 = vunpack.c.l.b16 %v124
    %v145 = vunpack.c.l.b16 %v125
    %v146 = vpack.c.b16 %v143, %v142
    %v147 = vpack.c.b16 %v145, %v144
    %vm150 = vcmask 261120
    %v152 = vsel %vm150, %v137, 0
    %154 = vmatprep.subr.bf16.mxu0 0
    %155 = vmatpush1.bf16.msra.mxu0 0
    %156 = vmatprep.subr.bf16.mxu0 0
    %157 = vmatpush1.bf16.msra.mxu0 0
    %158 = vmatprep.subr.bf16.mxu0 0
    %159 = vmatpush1.bf16.msra.mxu0 0
    %160 = vmatprep.subr.bf16.mxu0 0
    %161 = vmatpush1.bf16.msra.mxu0 0
    %162 = vmatprep.subr.bf16.mxu0 0
    %163 = vmatpush1.bf16.msra.mxu0 0
    %164 = vmatprep.subr.bf16.mxu0 0
    %165 = vmatpush1.bf16.msra.mxu0 0
    %166 = vmatprep.subr.bf16.mxu0 0
    %167 = vmatpush1.bf16.msra.mxu0 %v147
    %168 = vmatprep.subr.bf16.mxu0 0
    %169 = vmatpush1.bf16.msra.mxu0 %v146
    %170 = vmatprep.subr.bf16.mxu0 0
    %171 = vmatpush2.bf16.msra.mxu0 0
    %172 = vmatprep.subr.bf16.mxu0 0
    %173 = vmatpush2.bf16.msra.mxu0 0
    %174 = vmatprep.subr.bf16.mxu0 0
    %175 = vmatpush2.bf16.msra.mxu0 0
    %176 = vmatprep.subr.bf16.mxu0 0
    %177 = vmatpush2.bf16.msra.mxu0 0
    %178 = vmatprep.subr.bf16.mxu0 0
    %179 = vmatpush2.bf16.msra.mxu0 0
    %180 = vmatprep.subr.bf16.mxu0 0
    %181 = vmatpush2.bf16.msra.mxu0 0
    %182 = vmatprep.subr.bf16.mxu0 0
    %183 = vmatpush2.bf16.msra.mxu0 0
    %184 = vmatprep.subr.bf16.mxu0 0
    %185 = vmatpush2.bf16.msra.mxu0 0
    %186 = vmatprep.mubr.bf16.mxu0 0
    %187 = vmatmul.mubr.bf16.gmra.mxu0 %v152
    %v188 = vpop.f32.mrf.mxu0
    %v189 = vadd.f32 %v131, %v188
    %v190 = vpop.f32.mrf.mxu0
    %v191 = vpop.f32.mrf.mxu0
    %v192 = vadd.f32 %v131, %v191
    %v193 = vpop.f32.mrf.mxu0
    %194 = vdwg.mxu0
    %v195 = vpack.c.bf16 %v192, %v189
    %v197 = vunpack.c.l.b16 %v195
    %v198 = vunpack.c.h.b16 %v195
    %v199 = vpack.c.b16 %v197, %v197
    %v200 = vpack.c.b16 %v198, %v198
    %vm203 = vcmask 257024
    %204 = vst.msk [vmem:[#allocation13] sm:$0xf] %vm203, %v199
    %205 = vst.msk [vmem:[#allocation13 + $0x4] sm:$0xf] %vm203, %v200
    %v206 = vld [vmem:[#allocation5] sm:$0xf]
    %v207 = vld [vmem:[#allocation5 + $0x4] sm:$0xf]
    %v208 = vld [vmem:[#allocation10] sm:$0xf]
    %v209 = vld [vmem:[#allocation10 + $0x4] sm:$0xf]
    %v210 = vld [vmem:[#allocation10 + $0x8] sm:$0xf]
    %v211 = vld [vmem:[#allocation10 + $0xc] sm:$0xf]
    %v212 = vld [vmem:[%s6] sm:$0x1]
    %v214 = vlaneseq
    %v215 = vshrl.u32 %v214, 7
    %v216 = vsub.s32 0, %v215
    %v217 = vrot.slane %v212, %v216
    %v221 = vunpack.c.l.b16 %v206
    %v222 = vunpack.c.l.b16 %v207
    %v223 = vpack.c.b16 %v222, %v221
    %v228 = vunpack.c.l.b16 %v208
    %v229 = vunpack.c.l.b16 %v209
    %v230 = vunpack.c.l.b16 %v210
    %v231 = vunpack.c.l.b16 %v211
    %v232 = vpack.c.b16 %v229, %v228
    %v233 = vpack.c.b16 %v231, %v230
    %v237 = vsel %vm150, %v223, 0
    %239 = vmatprep.subr.bf16.mxu0 0
    %240 = vmatpush1.bf16.msra.mxu0 0
    %241 = vmatprep.subr.bf16.mxu0 0
    %242 = vmatpush1.bf16.msra.mxu0 0
    %243 = vmatprep.subr.bf16.mxu0 0
    %244 = vmatpush1.bf16.msra.mxu0 0
    %245 = vmatprep.subr.bf16.mxu0 0
    %246 = vmatpush1.bf16.msra.mxu0 0
    %247 = vmatprep.subr.bf16.mxu0 0
    %248 = vmatpush1.bf16.msra.mxu0 0
    %249 = vmatprep.subr.bf16.mxu0 0
    %250 = vmatpush1.bf16.msra.mxu0 0
    %251 = vmatprep.subr.bf16.mxu0 0
    %252 = vmatpush1.bf16.msra.mxu0 %v233
    %253 = vmatprep.subr.bf16.mxu0 0
    %254 = vmatpush1.bf16.msra.mxu0 %v232
    %255 = vmatprep.subr.bf16.mxu0 0
    %256 = vmatpush2.bf16.msra.mxu0 0
    %257 = vmatprep.subr.bf16.mxu0 0
    %258 = vmatpush2.bf16.msra.mxu0 0
    %259 = vmatprep.subr.bf16.mxu0 0
    %260 = vmatpush2.bf16.msra.mxu0 0
    %261 = vmatprep.subr.bf16.mxu0 0
    %262 = vmatpush2.bf16.msra.mxu0 0
    %263 = vmatprep.subr.bf16.mxu0 0
    %264 = vmatpush2.bf16.msra.mxu0 0
    %265 = vmatprep.subr.bf16.mxu0 0
    %266 = vmatpush2.bf16.msra.mxu0 0
    %267 = vmatprep.subr.bf16.mxu0 0
    %268 = vmatpush2.bf16.msra.mxu0 0
    %269 = vmatprep.subr.bf16.mxu0 0
    %270 = vmatpush2.bf16.msra.mxu0 0
    %271 = vmatprep.mubr.bf16.mxu0 0
    %272 = vmatmul.mubr.bf16.gmra.mxu0 %v237
    %v273 = vpop.f32.mrf.mxu0
    %v274 = vadd.f32 %v217, %v273
    %v275 = vpop.f32.mrf.mxu0
    %v276 = vpop.f32.mrf.mxu0
    %v277 = vadd.f32 %v217, %v276
    %v278 = vpop.f32.mrf.mxu0
    %279 = vdwg.mxu0
    %v280 = vpack.c.bf16 %v277, %v274
    %v282 = vunpack.c.l.b16 %v280
    %v283 = vunpack.c.h.b16 %v280
    %v284 = vpack.c.b16 %v282, %v282
    %v285 = vpack.c.b16 %v283, %v283
    %288 = vst.msk [vmem:[#allocation14] sm:$0xf] %vm203, %v284
    %289 = vst.msk [vmem:[#allocation14 + $0x4] sm:$0xf] %vm203, %v285
    %v290 = vld [vmem:[#allocation7] sm:$0xf]
    %v291 = vld [vmem:[#allocation7 + $0x4] sm:$0xf]
    %v292 = vld [vmem:[#allocation11] sm:$0xf]
    %v293 = vld [vmem:[#allocation11 + $0x4] sm:$0xf]
    %v294 = vld [vmem:[#allocation11 + $0x8] sm:$0xf]
    %v295 = vld [vmem:[#allocation11 + $0xc] sm:$0xf]
    %v296 = vld [vmem:[%s8] sm:$0x1]
    %v298 = vlaneseq
    %v299 = vshrl.u32 %v298, 7
    %v300 = vsub.s32 0, %v299
    %v301 = vrot.slane %v296, %v300
    %v305 = vunpack.c.l.b16 %v290
    %v306 = vunpack.c.l.b16 %v291
    %v307 = vpack.c.b16 %v306, %v305
    %v312 = vunpack.c.l.b16 %v292
    %v313 = vunpack.c.l.b16 %v293
    %v314 = vunpack.c.l.b16 %v294
    %v315 = vunpack.c.l.b16 %v295
    %v316 = vpack.c.b16 %v313, %v312
    %v317 = vpack.c.b16 %v315, %v314
    %v321 = vsel %vm150, %v307, 0
    %323 = vmatprep.subr.bf16.mxu0 0
    %324 = vmatpush1.bf16.msra.mxu0 0
    %325 = vmatprep.subr.bf16.mxu0 0
    %326 = vmatpush1.bf16.msra.mxu0 0
    %327 = vmatprep.subr.bf16.mxu0 0
    %328 = vmatpush1.bf16.msra.mxu0 0
    %329 = vmatprep.subr.bf16.mxu0 0
    %330 = vmatpush1.bf16.msra.mxu0 0
    %331 = vmatprep.subr.bf16.mxu0 0
    %332 = vmatpush1.bf16.msra.mxu0 0
    %333 = vmatprep.subr.bf16.mxu0 0
    %334 = vmatpush1.bf16.msra.mxu0 0
    %335 = vmatprep.subr.bf16.mxu0 0
    %336 = vmatpush1.bf16.msra.mxu0 %v317
    %337 = vmatprep.subr.bf16.mxu0 0
    %338 = vmatpush1.bf16.msra.mxu0 %v316
    %339 = vmatprep.subr.bf16.mxu0 0
    %340 = vmatpush2.bf16.msra.mxu0 0
    %341 = vmatprep.subr.bf16.mxu0 0
    %342 = vmatpush2.bf16.msra.mxu0 0
    %343 = vmatprep.subr.bf16.mxu0 0
    %344 = vmatpush2.bf16.msra.mxu0 0
    %345 = vmatprep.subr.bf16.mxu0 0
    %346 = vmatpush2.bf16.msra.mxu0 0
    %347 = vmatprep.subr.bf16.mxu0 0
    %348 = vmatpush2.bf16.msra.mxu0 0
    %349 = vmatprep.subr.bf16.mxu0 0
    %350 = vmatpush2.bf16.msra.mxu0 0
    %351 = vmatprep.subr.bf16.mxu0 0
    %352 = vmatpush2.bf16.msra.mxu0 0
    %353 = vmatprep.subr.bf16.mxu0 0
    %354 = vmatpush2.bf16.msra.mxu0 0
    %355 = vmatprep.mubr.bf16.mxu0 0
    %356 = vmatmul.mubr.bf16.gmra.mxu0 %v321
    %v357 = vpop.f32.mrf.mxu0
    %v358 = vadd.f32 %v301, %v357
    %v359 = vpop.f32.mrf.mxu0
    %v360 = vpop.f32.mrf.mxu0
    %v361 = vadd.f32 %v301, %v360
    %v362 = vpop.f32.mrf.mxu0
    %363 = vdwg.mxu0
    %v364 = vpack.c.bf16 %v361, %v358
    %v366 = vunpack.c.l.b16 %v364
    %v367 = vunpack.c.h.b16 %v364
    %v368 = vpack.c.b16 %v366, %v366
    %v369 = vpack.c.b16 %v367, %v367
    %372 = vst.msk [vmem:[#allocation16] sm:$0xf] %vm203, %v368
    %373 = vst.msk [vmem:[#allocation16 + $0x4] sm:$0xf] %vm203, %v369
    // Predicated region
    $region62: #{tpu_custom_call.1} parent=1 // pred_check
      _
    $region63: #{tpu_custom_call.1} parent=1 // pred_check_branch
      %375 = sbr.rel (0) target = $region65
    $region64: #{tpu_custom_call.1} parent=1 // pred_region
      %s377 = ssub.s32 128, 128
      %378 = vsyncadd [#allocation4], %s377
      %s379 = sshll.u32 [#allocation13], 4
      %s380 = int_to_ptr.vmem [resolvable:$true] %s379
      %385 = dma.vmem_to_hbm [thread:$0]  %s380, 128, %s9, [#allocation4], 64, 64, 4
    $region65: #{tpu_custom_call.1} parent=1 // pred_fallthru
      _
    // Predicated region
    $region66: #{tpu_custom_call.1} parent=1 // pred_check
      _
    $region67: #{tpu_custom_call.1} parent=1 // pred_check_branch
      %387 = sbr.rel (0) target = $region69
    $region68: #{tpu_custom_call.1} parent=1 // pred_region
      %s389 = ssub.s32 128, 128
      %390 = vsyncadd [#allocation15], %s389
      %s391 = sshll.u32 [#allocation14], 4
      %s392 = int_to_ptr.vmem [resolvable:$true] %s391
      %397 = dma.vmem_to_hbm [thread:$0]  %s392, 128, %s10, [#allocation15], 64, 64, 4
    $region69: #{tpu_custom_call.1} parent=1 // pred_fallthru
      _
    // Predicated region
    $region70: #{tpu_custom_call.1} parent=1 // pred_check
      _
    $region71: #{tpu_custom_call.1} parent=1 // pred_check_branch
      %399 = sbr.rel (0) target = $region73
    $region72: #{tpu_custom_call.1} parent=1 // pred_region
      %s401 = ssub.s32 128, 128
      %402 = vsyncadd [#allocation15], %s401
      %s403 = sshll.u32 [#allocation16], 4
      %s404 = int_to_ptr.vmem [resolvable:$true] %s403
      %409 = dma.vmem_to_hbm [thread:$0]  %s404, 128, %s11, [#allocation15], 64, 64, 4
    $region73: #{tpu_custom_call.1} parent=1 // pred_fallthru
      _
    // Predicated region
    $region74: #{tpu_custom_call.1} parent=1 // pred_check
      _
    $region75: #{tpu_custom_call.1} parent=1 // pred_check_branch
      %411 = sbr.rel (0) target = $region77
    $region76: #{tpu_custom_call.1} parent=1 // pred_region
      %412 = dma.done [#allocation4], 128
    $region77: #{tpu_custom_call.1} parent=1 // pred_fallthru
      _
    // Predicated region
    $region78: #{tpu_custom_call.1} parent=1 // pred_check
      _
    $region79: #{tpu_custom_call.1} parent=1 // pred_check_branch
      %414 = sbr.rel (0) target = $region81
    $region80: #{tpu_custom_call.1} parent=1 // pred_region
      %415 = dma.done [#allocation15], 128
    $region81: #{tpu_custom_call.1} parent=1 // pred_fallthru
      _
    // Predicated region
    $region82: #{tpu_custom_call.1} parent=1 // pred_check
      _
    $region83: #{tpu_custom_call.1} parent=1 // pred_check_branch
      %417 = sbr.rel (0) target = $region85
    $region84: #{tpu_custom_call.1} parent=1 // pred_region
      %418 = dma.done [#allocation15], 128
    $region85: #{tpu_custom_call.1} parent=1 // pred_fallthru
      _
    %419 = vsyncpa [#allocation3], 1
    %420 = vsyncpa [#allocation6], 1
    %421 = vsyncpa [#allocation9], 1
    %422 = vsyncpa [#allocation12], 1
    %423 = vsyncpa [#allocation4], 1
    %424 = vsyncpa [#allocation15], 1

</llo_original>
